<compile_context>
chip_gen: v6e
topology: v6e:2x2x1
jax: 0.10.0
libtpu: 0.0.40
codegen_flags: <defaults>
</compile_context>

<pallas_src>
import math

import jax
import jax.numpy as jnp
from jax.experimental import pallas as pl
from jax.experimental.pallas import tpu as pltpu

_INV_SQRT2 = 0.7071067811865476  # hoisted 1/sqrt(2)


def _round_up(x, m):
    return ((x + m - 1) // m) * m


def _ffn_kernel(x_ref, w1h_ref, w1g_ref, b1h_ref, b1g_ref, w2_ref, b2_ref,
                o_ref, acc_ref):
    # x_ref:   (TM, dim)        compute dtype (bf16 or f32)
    # w1h/w1g: (dim, TN)        compute dtype
    # b1h/b1g: (1, TN)          f32
    # w2_ref:  (TN, dim)        compute dtype
    # b2_ref:  (1, dim)         f32
    # acc_ref: (TM, dim)        f32 accumulator (persists across k)
    k = pl.program_id(1)

    @pl.when(k == 0)
    def _init():
        acc_ref[...] = jnp.zeros_like(acc_ref)

    x = x_ref[...]

    # GEGLU projection, one inner tile at a time (f32 accumulation on the MXU).
    h = jnp.dot(x, w1h_ref[...], preferred_element_type=jnp.float32) + b1h_ref[...]
    g = jnp.dot(x, w1g_ref[...], preferred_element_type=jnp.float32) + b1g_ref[...]

    # Exact (erf) GELU in f32, matching torch.nn.functional.gelu default.
    gelu_g = 0.5 * g * (1.0 + jax.lax.erf(g * _INV_SQRT2))
    act = (h * gelu_g).astype(w2_ref.dtype)

    # Output Linear(inner -> dim): accumulate this inner tile's contribution.
    acc_ref[...] += jnp.dot(act, w2_ref[...], preferred_element_type=jnp.float32)

    @pl.when(k == pl.num_programs(1) - 1)
    def _finalize():
        o_ref[...] = (acc_ref[...] + b2_ref[...]).astype(o_ref.dtype)


def feed_forward(x, w1, b1, w2, b2, *, tm=256, tn=None,
                 compute_dtype=jnp.bfloat16):
    """x: (batch, seq, dim); w1: (dim, 2*inner); w2: (inner, dim)."""
    batch, seq, dim = x.shape
    inner = w2.shape[0]
    assert w1.shape == (dim, 2 * inner)
    M = batch * seq

    # Token tile: align to sublane packing (8 for f32, 16 for bf16), clamp to M.
    align = 32 // jnp.dtype(compute_dtype).itemsize
    tm_eff = _round_up(min(tm, _round_up(M, align)), align)
    M_pad = _round_up(M, tm_eff)

    # Inner tile: largest preferred size dividing inner, else the full inner.
    if tn is None:
        for cand in (512, 1024, 256, 128):
            if inner % cand == 0:
                tn = cand
                break
        else:
            tn = inner
    tn = min(tn, inner)
    assert inner % tn == 0, "inner tile must divide the inner dimension"

    x2d = x.reshape(M, dim).astype(compute_dtype)
    if M_pad != M:
        x2d = jnp.pad(x2d, ((0, M_pad - M), (0, 0)))

    # Split GEGLU projection into hidden / gate slabs so each inner tile is
    # computed without materializing a (tm, 2*inner) intermediate.
    w1h = w1[:, :inner].astype(compute_dtype)
    w1g = w1[:, inner:].astype(compute_dtype)
    b1h = b1[:inner].astype(jnp.float32).reshape(1, inner)
    b1g = b1[inner:].astype(jnp.float32).reshape(1, inner)
    w2c = w2.astype(compute_dtype)
    b2c = b2.astype(jnp.float32).reshape(1, dim)

    grid = (M_pad // tm_eff, inner // tn)

    # VMEM budget from the actual tiles (double-buffered inputs/outputs),
    # capped at 64 MiB so the same configuration also fits v7x.
    cb = jnp.dtype(compute_dtype).itemsize
    ob = jnp.dtype(x.dtype).itemsize
    est = (2 * tm_eff * dim * cb            # x tile
           + 2 * 2 * dim * tn * cb          # w1h + w1g tiles
           + 2 * tn * dim * cb              # w2 tile
           + 2 * (2 * tn + dim) * 4         # biases
           + tm_eff * dim * 4               # f32 accumulator
           + 2 * tm_eff * dim * ob)         # output tile
    vmem_limit = int(min(max(2 * est, 16 * 1024 * 1024), 64 * 1024 * 1024))

    out2d = pl.pallas_call(
        _ffn_kernel,
        out_shape=jax.ShapeDtypeStruct((M_pad, dim), x.dtype),
        grid_spec=pltpu.PrefetchScalarGridSpec(
            num_scalar_prefetch=0,
            grid=grid,
            in_specs=[
                pl.BlockSpec((tm_eff, dim), lambda i, k: (i, 0)),  # x tile
                pl.BlockSpec((dim, tn), lambda i, k: (0, k)),      # W1 hidden cols
                pl.BlockSpec((dim, tn), lambda i, k: (0, k)),      # W1 gate cols
                pl.BlockSpec((1, tn), lambda i, k: (0, k)),        # b1 hidden
                pl.BlockSpec((1, tn), lambda i, k: (0, k)),        # b1 gate
                pl.BlockSpec((tn, dim), lambda i, k: (k, 0)),      # W2 rows
                pl.BlockSpec((1, dim), lambda i, k: (0, 0)),       # b2
            ],
            out_specs=pl.BlockSpec((tm_eff, dim), lambda i, k: (i, 0)),
            scratch_shapes=[pltpu.VMEM((tm_eff, dim), jnp.float32)],
        ),
        compiler_params=pltpu.CompilerParams(
            dimension_semantics=("parallel", "arbitrary"),
            vmem_limit_bytes=vmem_limit,
        ),
    )(x2d, w1h, w1g, b1h, b1g, w2c, b2c)

    return out2d[:M].reshape(batch, seq, dim)


def _reference(x, w1, b1, w2, b2, compute_dtype=None):
    """Pure-JAX reference; optionally mimics the kernel's matmul dtype."""
    M = x.shape[0] * x.shape[1]
    dim = x.shape[-1]
    inner = w2.shape[0]
    xd = x.reshape(M, dim)
    if compute_dtype is not None:
        xd = xd.astype(compute_dtype)
        w1 = w1.astype(compute_dtype)
        w2 = w2.astype(compute_dtype)
    h = jnp.dot(xd, w1, preferred_element_type=jnp.float32) + b1
    hidden, gate = h[:, :inner], h[:, inner:]
    act = hidden * (0.5 * gate * (1.0 + jax.lax.erf(gate * _INV_SQRT2)))
    if compute_dtype is not None:
        act = act.astype(compute_dtype)
    out = jnp.dot(act, w2, preferred_element_type=jnp.float32) + b2
    return out.reshape(x.shape).astype(x.dtype)


if __name__ == "__main__":
    batch, seq, dim = 2, 8, 32
    inner = 4 * dim

    key = jax.random.PRNGKey(0)
    kx, kw1, kb1, kw2, kb2 = jax.random.split(key, 5)

    x = jax.random.normal(kx, (batch, seq, dim), dtype=jnp.float32)

    # PyTorch Linear-style uniform(-1/sqrt(fan_in), +1/sqrt(fan_in)) params.
    bound1 = 1.0 / math.sqrt(dim)
    w1 = jax.random.uniform(kw1, (dim, 2 * inner), jnp.float32, -bound1, bound1)
    b1 = jax.random.uniform(kb1, (2 * inner,), jnp.float32, -bound1, bound1)
    bound2 = 1.0 / math.sqrt(inner)
    w2 = jax.random.uniform(kw2, (inner, dim), jnp.float32, -bound2, bound2)
    b2 = jax.random.uniform(kb2, (dim,), jnp.float32, -bound2, bound2)

    # f32 path: exact check against the pure-f32 reference.
    out_f32 = jax.block_until_ready(
        feed_forward(x, w1, b1, w2, b2, compute_dtype=jnp.float32))
    ref_f32 = _reference(x, w1, b1, w2, b2)
    assert out_f32.shape == (batch, seq, dim)
    assert jnp.allclose(out_f32, ref_f32, atol=1e-4, rtol=1e-4)

    # bf16 MXU path (default): compare against a matched-precision reference,
    # and loosely against the f32 reference.
    out_bf16 = jax.block_until_ready(feed_forward(x, w1, b1, w2, b2))
    ref_bf16 = _reference(x, w1, b1, w2, b2, compute_dtype=jnp.bfloat16)
    assert out_bf16.shape == (batch, seq, dim)
    assert jnp.allclose(out_bf16, ref_bf16, atol=2e-2, rtol=2e-2)
    assert jnp.allclose(out_bf16, ref_f32, atol=1e-1, rtol=1e-1)

    print("KERNEL_OK")
</pallas_src>

<mosaic_0001>
module attributes {stable_mosaic.version = 11 : i64} {
  func.func @_ffn_kernel(%arg0: i32, %arg1: i32, %arg2: memref<16x32xf32, #tpu.memory_space<vmem>>, %arg3: memref<32x128xf32, #tpu.memory_space<vmem>>, %arg4: memref<32x128xf32, #tpu.memory_space<vmem>>, %arg5: memref<1x128xf32, #tpu.memory_space<vmem>>, %arg6: memref<1x128xf32, #tpu.memory_space<vmem>>, %arg7: memref<128x32xf32, #tpu.memory_space<vmem>>, %arg8: memref<1x32xf32, #tpu.memory_space<vmem>>, %arg9: memref<16x32xf32, #tpu.memory_space<vmem>>, %arg10: memref<16x32xf32, #tpu.memory_space<vmem>>) attributes {dimension_semantics = [#tpu.dimension_semantics<parallel>, #tpu.dimension_semantics<arbitrary>], iteration_bounds = array<i64: 1, 1>, scalar_prefetch = 0 : i64, scratch_operands = 1 : i64, tpu.core_type = #tpu.core_type<tc>, window_params = [{transform_indices = @transform_0, window_bounds = array<i64: 16, 32>}, {transform_indices = @transform_1, window_bounds = array<i64: 32, 128>}, {transform_indices = @transform_2, window_bounds = array<i64: 32, 128>}, {transform_indices = @transform_3, window_bounds = array<i64: 1, 128>}, {transform_indices = @transform_4, window_bounds = array<i64: 1, 128>}, {transform_indices = @transform_5, window_bounds = array<i64: 128, 32>}, {pipeline_mode = #tpu.pipeline_mode<synchronous>, transform_indices = @transform_6, window_bounds = array<i64: 1, 32>}, {transform_indices = @transform_7, window_bounds = array<i64: 16, 32>}]} {
    %c0_i32 = arith.constant 0 : i32
    %0 = arith.cmpi eq, %arg1, %c0_i32 : i32
    %1 = arith.extui %0 : i1 to i32
    %c0_i32_0 = arith.constant 0 : i32
    %2 = arith.cmpi ne, %1, %c0_i32_0 : i32
    scf.if %2 {
      %cst_23 = arith.constant 0.000000e+00 : f32
      %31 = vector.broadcast %cst_23 : f32 to vector<16x32xf32>
      %c0_24 = arith.constant 0 : index
      %c0_25 = arith.constant 0 : index
      %32 = vector.load %arg10[%c0_24, %c0_25] : memref<16x32xf32, #tpu.memory_space<vmem>>, vector<16x32xf32>
      tpu.vector_store %arg10[%c0_24, %c0_25], %31 {strides = array<i32>} : memref<16x32xf32, #tpu.memory_space<vmem>>, vector<16x32xf32>,
    } else {
    }
    %c0 = arith.constant 0 : index
    %c0_1 = arith.constant 0 : index
    %3 = vector.load %arg2[%c0, %c0_1] : memref<16x32xf32, #tpu.memory_space<vmem>>, vector<16x32xf32>
    %c0_2 = arith.constant 0 : index
    %c0_3 = arith.constant 0 : index
    %4 = vector.load %arg3[%c0_2, %c0_3] : memref<32x128xf32, #tpu.memory_space<vmem>>, vector<32x128xf32>
    %cst = arith.constant dense<0.000000e+00> : vector<16x128xf32>
    %5 = tpu.matmul %3, %4, %cst {dimension_numbers = #tpu.dot_dimension_numbers<[1], [0], [0], [1], [0, 0, 1, 1], [], []>} : vector<16x32xf32>, vector<32x128xf32>, vector<16x128xf32> -> vector<16x128xf32>
    %c0_4 = arith.constant 0 : index
    %c0_5 = arith.constant 0 : index
    %6 = vector.load %arg5[%c0_4, %c0_5] : memref<1x128xf32, #tpu.memory_space<vmem>>, vector<1x128xf32>
    %7 = vector.broadcast %6 : vector<1x128xf32> to vector<16x128xf32>
    %8 = arith.addf %5, %7 : vector<16x128xf32>
    %c0_6 = arith.constant 0 : index
    %c0_7 = arith.constant 0 : index
    %9 = vector.load %arg4[%c0_6, %c0_7] : memref<32x128xf32, #tpu.memory_space<vmem>>, vector<32x128xf32>
    %cst_8 = arith.constant dense<0.000000e+00> : vector<16x128xf32>
    %10 = tpu.matmul %3, %9, %cst_8 {dimension_numbers = #tpu.dot_dimension_numbers<[1], [0], [0], [1], [0, 0, 1, 1], [], []>} : vector<16x32xf32>, vector<32x128xf32>, vector<16x128xf32> -> vector<16x128xf32>
    %c0_9 = arith.constant 0 : index
    %c0_10 = arith.constant 0 : index
    %11 = vector.load %arg6[%c0_9, %c0_10] : memref<1x128xf32, #tpu.memory_space<vmem>>, vector<1x128xf32>
    %12 = vector.broadcast %11 : vector<1x128xf32> to vector<16x128xf32>
    %13 = arith.addf %10, %12 : vector<16x128xf32>
    %cst_11 = arith.constant 5.000000e-01 : f32
    %14 = vector.broadcast %cst_11 : f32 to vector<16x128xf32>
    %15 = arith.mulf %14, %13 : vector<16x128xf32>
    %cst_12 = arith.constant 0.707106769 : f32
    %16 = vector.broadcast %cst_12 : f32 to vector<16x128xf32>
    %17 = arith.mulf %13, %16 : vector<16x128xf32>
    %18 = math.erf %17 : vector<16x128xf32>
    %cst_13 = arith.constant 1.000000e+00 : f32
    %19 = vector.broadcast %cst_13 : f32 to vector<16x128xf32>
    %20 = arith.addf %19, %18 : vector<16x128xf32>
    %21 = arith.mulf %15, %20 : vector<16x128xf32>
    %22 = arith.mulf %8, %21 : vector<16x128xf32>
    %c0_14 = arith.constant 0 : index
    %c0_15 = arith.constant 0 : index
    %23 = vector.load %arg10[%c0_14, %c0_15] : memref<16x32xf32, #tpu.memory_space<vmem>>, vector<16x32xf32>
    %c0_16 = arith.constant 0 : index
    %c0_17 = arith.constant 0 : index
    %24 = vector.load %arg7[%c0_16, %c0_17] : memref<128x32xf32, #tpu.memory_space<vmem>>, vector<128x32xf32>
    %cst_18 = arith.constant dense<0.000000e+00> : vector<16x32xf32>
    %25 = tpu.matmul %22, %24, %cst_18 {dimension_numbers = #tpu.dot_dimension_numbers<[1], [0], [0], [1], [0, 0, 1, 1], [], []>} : vector<16x128xf32>, vector<128x32xf32>, vector<16x32xf32> -> vector<16x32xf32>
    %26 = arith.addf %23, %25 : vector<16x32xf32>
    %c0_19 = arith.constant 0 : index
    %c0_20 = arith.constant 0 : index
    %27 = vector.load %arg10[%c0_19, %c0_20] : memref<16x32xf32, #tpu.memory_space<vmem>>, vector<16x32xf32>
    tpu.vector_store %arg10[%c0_19, %c0_20], %26 {strides = array<i32>} : memref<16x32xf32, #tpu.memory_space<vmem>>, vector<16x32xf32>,
    %c0_i32_21 = arith.constant 0 : i32
    %28 = arith.cmpi eq, %arg1, %c0_i32_21 : i32
    %29 = arith.extui %28 : i1 to i32
    %c0_i32_22 = arith.constant 0 : i32
    %30 = arith.cmpi ne, %29, %c0_i32_22 : i32
    scf.if %30 {
      %c0_23 = arith.constant 0 : index
      %c0_24 = arith.constant 0 : index
      %31 = vector.load %arg10[%c0_23, %c0_24] : memref<16x32xf32, #tpu.memory_space<vmem>>, vector<16x32xf32>
      %c0_25 = arith.constant 0 : index
      %c0_26 = arith.constant 0 : index
      %32 = vector.load %arg8[%c0_25, %c0_26] : memref<1x32xf32, #tpu.memory_space<vmem>>, vector<1x32xf32>
      %33 = vector.broadcast %32 : vector<1x32xf32> to vector<16x32xf32>
      %34 = arith.addf %31, %33 : vector<16x32xf32>
      %c0_27 = arith.constant 0 : index
      %c0_28 = arith.constant 0 : index
      %35 = vector.load %arg9[%c0_27, %c0_28] : memref<16x32xf32, #tpu.memory_space<vmem>>, vector<16x32xf32>
      tpu.vector_store %arg9[%c0_27, %c0_28], %34 {strides = array<i32>} : memref<16x32xf32, #tpu.memory_space<vmem>>, vector<16x32xf32>,
    } else {
    }
    return
  }
  func.func @transform_0(%arg0: i32, %arg1: i32) -> (i32, i32) {
    %c0_i32 = arith.constant 0 : i32
    %c0_i32_0 = arith.constant 0 : i32
    return %arg0, %c0_i32 : i32, i32
  }
  func.func @transform_1(%arg0: i32, %arg1: i32) -> (i32, i32) {
    %c0_i32 = arith.constant 0 : i32
    %c0_i32_0 = arith.constant 0 : i32
    return %c0_i32, %arg1 : i32, i32
  }
  func.func @transform_2(%arg0: i32, %arg1: i32) -> (i32, i32) {
    %c0_i32 = arith.constant 0 : i32
    %c0_i32_0 = arith.constant 0 : i32
    return %c0_i32, %arg1 : i32, i32
  }
  func.func @transform_3(%arg0: i32, %arg1: i32) -> (i32, i32) {
    %c0_i32 = arith.constant 0 : i32
    %c0_i32_0 = arith.constant 0 : i32
    return %c0_i32, %arg1 : i32, i32
  }
  func.func @transform_4(%arg0: i32, %arg1: i32) -> (i32, i32) {
    %c0_i32 = arith.constant 0 : i32
    %c0_i32_0 = arith.constant 0 : i32
    return %c0_i32, %arg1 : i32, i32
  }
  func.func @transform_5(%arg0: i32, %arg1: i32) -> (i32, i32) {
    %c0_i32 = arith.constant 0 : i32
    %c0_i32_0 = arith.constant 0 : i32
    return %arg1, %c0_i32 : i32, i32
  }
  func.func @transform_6(%arg0: i32, %arg1: i32) -> (i32, i32) {
    %c0_i32 = arith.constant 0 : i32
    %c0_i32_0 = arith.constant 0 : i32
    %c0_i32_1 = arith.constant 0 : i32
    return %c0_i32, %c0_i32_0 : i32, i32
  }
  func.func @transform_7(%arg0: i32, %arg1: i32) -> (i32, i32) {
    %c0_i32 = arith.constant 0 : i32
    %c0_i32_0 = arith.constant 0 : i32
    return %arg0, %c0_i32 : i32, i32
  }
}

</mosaic_0001>

<llo_original>
// kernel: tpu_custom_call.1
$region0: #{tpu_custom_call.1}
  #allocation0 [shape = 'u32[]', space=smem, size = 0x4, offset = 0x4, fixed_abs, tag = 'smem constant byte address 0x4 - core index']
  #allocation1 [shape = 'u32[144,128]{1,0:T(1,128)}', space=vmem, size = 0x12000, scoped, tag = 'internal scratch']
  #allocation2 [shape = 'f32[16,32]{1,0:T(8,128)}', space=vmem, size = 0x2000, scoped, tag = 'scratch operand']
  %s0 = inlined_call_operand.vmem [shape: f32[16,32], index: 0, kind: input, shape index: {}]
  %s1 = inlined_call_operand.vmem [shape: f32[32,128], index: 1, kind: input, shape index: {}]
  %s2 = inlined_call_operand.vmem [shape: f32[32,128], index: 2, kind: input, shape index: {}]
  %s3 = inlined_call_operand.vmem [shape: f32[1,128], index: 3, kind: input, shape index: {}]
  %s4 = inlined_call_operand.vmem [shape: f32[1,128], index: 4, kind: input, shape index: {}]
  %s5 = inlined_call_operand.vmem [shape: f32[128,32], index: 5, kind: input, shape index: {}]
  %s6 = inlined_call_operand.vmem [shape: f32[1,32], index: 6, kind: input, shape index: {}]
  %s7 = inlined_call_operand.hbm [shape: f32[16,32], index: 7, kind: output, shape index: {}]
  %s8 = sld [smem:[#allocation0]]
  $region46: #{tpu_custom_call.1} parent=0
    _
  %s10 = ssub.s32 1, %s8
  %s11 = scalar_select 0, %s10, %s8
  $region1: #{tpu_custom_call.1} parent=0
    #allocation3 [shape = 'u8[8192]{0}', space=vmem, size = 0x2000, scoped, tag = 'output window, operand 0, single buffered']
    #allocation4 [shape = 's32[1]{0}', space=sflag, size = 0x4, scoped, tag = 'scoped memory for tpu_custom_call.1']
    %12 = vsyncpa [#allocation4], 0
    // Predicated region
    $region2: #{tpu_custom_call.1} parent=1 // pred_check
      _
    $region3: #{tpu_custom_call.1} parent=1 // pred_check_branch
      %14 = sbr.rel (0) target = $region5
    $region4: #{tpu_custom_call.1} parent=1 // pred_region
      _
    $region5: #{tpu_custom_call.1} parent=1 // pred_fallthru
      _
    // Predicated region
    $region6: #{tpu_custom_call.1} parent=1 // pred_check
      _
    $region7: #{tpu_custom_call.1} parent=1 // pred_check_branch
      %16 = sbr.rel (0) target = $region9
    $region8: #{tpu_custom_call.1} parent=1 // pred_region
      _
    $region9: #{tpu_custom_call.1} parent=1 // pred_fallthru
      _
    // Predicated region
    $region10: #{tpu_custom_call.1} parent=1 // pred_check
      _
    $region11: #{tpu_custom_call.1} parent=1 // pred_check_branch
      %18 = sbr.rel (0) target = $region13
    $region12: #{tpu_custom_call.1} parent=1 // pred_region
      _
    $region13: #{tpu_custom_call.1} parent=1 // pred_fallthru
      _
    // Predicated region
    $region14: #{tpu_custom_call.1} parent=1 // pred_check
      _
    $region15: #{tpu_custom_call.1} parent=1 // pred_check_branch
      %20 = sbr.rel (0) target = $region17
    $region16: #{tpu_custom_call.1} parent=1 // pred_region
      _
    $region17: #{tpu_custom_call.1} parent=1 // pred_fallthru
      _
    // Predicated region
    $region18: #{tpu_custom_call.1} parent=1 // pred_check
      _
    $region19: #{tpu_custom_call.1} parent=1 // pred_check_branch
      %22 = sbr.rel (0) target = $region21
    $region20: #{tpu_custom_call.1} parent=1 // pred_region
      _
    $region21: #{tpu_custom_call.1} parent=1 // pred_fallthru
      _
    // Predicated region
    $region22: #{tpu_custom_call.1} parent=1 // pred_check
      _
    $region23: #{tpu_custom_call.1} parent=1 // pred_check_branch
      %24 = sbr.rel (0) target = $region25
    $region24: #{tpu_custom_call.1} parent=1 // pred_region
      _
    $region25: #{tpu_custom_call.1} parent=1 // pred_fallthru
      _
    // Predicated region
    $region26: #{tpu_custom_call.1} parent=1 // pred_check
      _
    $region27: #{tpu_custom_call.1} parent=1 // pred_check_branch
      %26 = sbr.rel (0) target = $region29
    $region28: #{tpu_custom_call.1} parent=1 // pred_region
      _
    $region29: #{tpu_custom_call.1} parent=1 // pred_fallthru
      _
    %p27 = scmp.eq.s32.totalorder 0, 0
    // Predicated region
    $region30: #{tpu_custom_call.1} parent=1 // pred_check
      %p28 = pneg %p27
    $region31: #{tpu_custom_call.1} parent=1 // pred_check_branch
      %30 = sbr.rel (%p28) target = $region33
    $region32: #{tpu_custom_call.1} parent=1 // pred_region
      %vm31 = vcmask 261120
      %32 = vst.msk [vmem:[#allocation2] sm:$0xff] %vm31, 0.0
      %33 = vst.msk [vmem:[#allocation2 + $0x8] sm:$0xff] %vm31, 0.0
    $region33: #{tpu_custom_call.1} parent=1 // pred_fallthru
      _
    %v34 = vld [vmem:[%s0] sm:$0xff]
    %v35 = vld [vmem:[%s0 + $0x8] sm:$0xff]
    %v36 = vld [vmem:[%s1] sm:$0xff]
    %v37 = vld [vmem:[%s1 + $0x8] sm:$0xff]
    %v38 = vld [vmem:[%s1 + $0x10] sm:$0xff]
    %v39 = vld [vmem:[%s1 + $0x18] sm:$0xff]
    %v40 = vld [vmem:[%s3] sm:$0x1]
    %v42 = vlaneseq
    %v43 = vshrl.u32 %v42, 7
    %v44 = vsub.s32 0, %v43
    %v45 = vrot.slane %v40, %v44
    %vm47 = vcmask 261120
    %v49 = vsel %vm47, %v34, 0
    %v52 = vsel %vm47, %v35, 0
    %54 = vmatprep.subr.mxu0 0.0
    %55 = vmatpush1.msra.mxu0 0.0
    %56 = vmatprep.subr.mxu0 0.0
    %57 = vmatpush1.msra.mxu0 0.0
    %58 = vmatprep.subr.mxu0 0.0
    %59 = vmatpush1.msra.mxu0 0.0
    %60 = vmatprep.subr.mxu0 0.0
    %61 = vmatpush1.msra.mxu0 0.0
    %62 = vmatprep.subr.mxu0 0.0
    %63 = vmatpush1.msra.mxu0 0.0
    %64 = vmatprep.subr.mxu0 0.0
    %65 = vmatpush1.msra.mxu0 0.0
    %66 = vmatprep.subr.mxu0 0.0
    %67 = vmatpush1.msra.mxu0 0.0
    %68 = vmatprep.subr.mxu0 0.0
    %69 = vmatpush1.msra.mxu0 0.0
    %70 = vmatprep.subr.mxu0 0.0
    %71 = vmatpush1.msra.mxu0 0.0
    %72 = vmatprep.subr.mxu0 0.0
    %73 = vmatpush1.msra.mxu0 0.0
    %74 = vmatprep.subr.mxu0 0.0
    %75 = vmatpush1.msra.mxu0 0.0
    %76 = vmatprep.subr.mxu0 0.0
    %77 = vmatpush1.msra.mxu0 0.0
    %78 = vmatprep.subr.mxu0 0.0
    %79 = vmatpush1.msra.mxu0 %v39
    %80 = vmatprep.subr.mxu0 0.0
    %81 = vmatpush1.msra.mxu0 %v38
    %82 = vmatprep.subr.mxu0 0.0
    %83 = vmatpush1.msra.mxu0 %v37
    %84 = vmatprep.subr.mxu0 0.0
    %85 = vmatpush1.msra.mxu0 %v36
    %86 = vmatprep.subr.mxu0 0.0
    %87 = vmatpush2.msra.mxu0 0.0
    %88 = vmatprep.subr.mxu0 0.0
    %89 = vmatpush2.msra.mxu0 0.0
    %90 = vmatprep.subr.mxu0 0.0
    %91 = vmatpush2.msra.mxu0 0.0
    %92 = vmatprep.subr.mxu0 0.0
    %93 = vmatpush2.msra.mxu0 0.0
    %94 = vmatprep.subr.mxu0 0.0
    %95 = vmatpush2.msra.mxu0 0.0
    %96 = vmatprep.subr.mxu0 0.0
    %97 = vmatpush2.msra.mxu0 0.0
    %98 = vmatprep.subr.mxu0 0.0
    %99 = vmatpush2.msra.mxu0 0.0
    %100 = vmatprep.subr.mxu0 0.0
    %101 = vmatpush2.msra.mxu0 0.0
    %102 = vmatprep.subr.mxu0 0.0
    %103 = vmatpush2.msra.mxu0 0.0
    %104 = vmatprep.subr.mxu0 0.0
    %105 = vmatpush2.msra.mxu0 0.0
    %106 = vmatprep.subr.mxu0 0.0
    %107 = vmatpush2.msra.mxu0 0.0
    %108 = vmatprep.subr.mxu0 0.0
    %109 = vmatpush2.msra.mxu0 0.0
    %110 = vmatprep.subr.mxu0 0.0
    %111 = vmatpush2.msra.mxu0 0.0
    %112 = vmatprep.subr.mxu0 0.0
    %113 = vmatpush2.msra.mxu0 0.0
    %114 = vmatprep.subr.mxu0 0.0
    %115 = vmatpush2.msra.mxu0 0.0
    %116 = vmatprep.subr.mxu0 0.0
    %117 = vmatpush2.msra.mxu0 0.0
    %118 = vmatprep.mubr.f32.mxu0 0.0
    %119 = vmatmul.mubr.f32.gmra.mxu0 %v49
    %v120 = vpop.f32.mrf.mxu0
    %v121 = vadd.f32 %v45, %v120
    %v122 = vpop.f32.mrf.mxu0
    %123 = vmatprep.mubr.f32.mxu0 0.0
    %124 = vmatmul.mubr.f32.gmra.mxu0 %v52
    %v125 = vpop.f32.mrf.mxu0
    %v126 = vadd.f32 %v45, %v125
    %v127 = vpop.f32.mrf.mxu0
    %128 = vdwg.mxu0
    %v129 = vld [vmem:[%s2] sm:$0xff]
    %v130 = vld [vmem:[%s2 + $0x8] sm:$0xff]
    %v131 = vld [vmem:[%s2 + $0x10] sm:$0xff]
    %v132 = vld [vmem:[%s2 + $0x18] sm:$0xff]
    %v133 = vld [vmem:[%s4] sm:$0x1]
    %v135 = vlaneseq
    %v136 = vshrl.u32 %v135, 7
    %v137 = vsub.s32 0, %v136
    %v138 = vrot.slane %v133, %v137
    %140 = vmatprep.subr.mxu0 0.0
    %141 = vmatpush1.msra.mxu0 0.0
    %142 = vmatprep.subr.mxu0 0.0
    %143 = vmatpush1.msra.mxu0 0.0
    %144 = vmatprep.subr.mxu0 0.0
    %145 = vmatpush1.msra.mxu0 0.0
    %146 = vmatprep.subr.mxu0 0.0
    %147 = vmatpush1.msra.mxu0 0.0
    %148 = vmatprep.subr.mxu0 0.0
    %149 = vmatpush1.msra.mxu0 0.0
    %150 = vmatprep.subr.mxu0 0.0
    %151 = vmatpush1.msra.mxu0 0.0
    %152 = vmatprep.subr.mxu0 0.0
    %153 = vmatpush1.msra.mxu0 0.0
    %154 = vmatprep.subr.mxu0 0.0
    %155 = vmatpush1.msra.mxu0 0.0
    %156 = vmatprep.subr.mxu0 0.0
    %157 = vmatpush1.msra.mxu0 0.0
    %158 = vmatprep.subr.mxu0 0.0
    %159 = vmatpush1.msra.mxu0 0.0
    %160 = vmatprep.subr.mxu0 0.0
    %161 = vmatpush1.msra.mxu0 0.0
    %162 = vmatprep.subr.mxu0 0.0
    %163 = vmatpush1.msra.mxu0 0.0
    %164 = vmatprep.subr.mxu0 0.0
    %165 = vmatpush1.msra.mxu0 %v132
    %166 = vmatprep.subr.mxu0 0.0
    %167 = vmatpush1.msra.mxu0 %v131
    %168 = vmatprep.subr.mxu0 0.0
    %169 = vmatpush1.msra.mxu0 %v130
    %170 = vmatprep.subr.mxu0 0.0
    %171 = vmatpush1.msra.mxu0 %v129
    %172 = vmatprep.subr.mxu0 0.0
    %173 = vmatpush2.msra.mxu0 0.0
    %174 = vmatprep.subr.mxu0 0.0
    %175 = vmatpush2.msra.mxu0 0.0
    %176 = vmatprep.subr.mxu0 0.0
    %177 = vmatpush2.msra.mxu0 0.0
    %178 = vmatprep.subr.mxu0 0.0
    %179 = vmatpush2.msra.mxu0 0.0
    %180 = vmatprep.subr.mxu0 0.0
    %181 = vmatpush2.msra.mxu0 0.0
    %182 = vmatprep.subr.mxu0 0.0
    %183 = vmatpush2.msra.mxu0 0.0
    %184 = vmatprep.subr.mxu0 0.0
    %185 = vmatpush2.msra.mxu0 0.0
    %186 = vmatprep.subr.mxu0 0.0
    %187 = vmatpush2.msra.mxu0 0.0
    %188 = vmatprep.subr.mxu0 0.0
    %189 = vmatpush2.msra.mxu0 0.0
    %190 = vmatprep.subr.mxu0 0.0
    %191 = vmatpush2.msra.mxu0 0.0
    %192 = vmatprep.subr.mxu0 0.0
    %193 = vmatpush2.msra.mxu0 0.0
    %194 = vmatprep.subr.mxu0 0.0
    %195 = vmatpush2.msra.mxu0 0.0
    %196 = vmatprep.subr.mxu0 0.0
    %197 = vmatpush2.msra.mxu0 0.0
    %198 = vmatprep.subr.mxu0 0.0
    %199 = vmatpush2.msra.mxu0 0.0
    %200 = vmatprep.subr.mxu0 0.0
    %201 = vmatpush2.msra.mxu0 0.0
    %202 = vmatprep.subr.mxu0 0.0
    %203 = vmatpush2.msra.mxu0 0.0
    %204 = vmatprep.mubr.f32.mxu0 0.0
    %205 = vmatmul.mubr.f32.gmra.mxu0 %v49
    %v206 = vpop.f32.mrf.mxu0
    %v207 = vadd.f32 %v138, %v206
    %v208 = vpop.f32.mrf.mxu0
    %209 = vmatprep.mubr.f32.mxu0 0.0
    %210 = vmatmul.mubr.f32.gmra.mxu0 %v52
    %v211 = vpop.f32.mrf.mxu0
    %v212 = vadd.f32 %v138, %v211
    %v213 = vpop.f32.mrf.mxu0
    %214 = vdwg.mxu0
    %v215 = vmul.f32 %v207, 0.5
    %v216 = vmul.f32 %v212, 0.5
    %v217 = vmul.f32 %v207, 0.70710677
    %v218 = vmul.f32 %v212, 0.70710677
    %v219 = verf.f32.pop %v217
    %v220 = verf.f32.pop %v218
    %v221 = vadd.f32 %v219, 1.0
    %v222 = vadd.f32 %v220, 1.0
    %v223 = vmul.f32 %v215, %v221
    %v224 = vmul.f32 %v216, %v222
    %v225 = vmul.f32 %v121, %v223
    %v226 = vmul.f32 %v126, %v224
    %v227 = vld [vmem:[#allocation2] sm:$0xff]
    %v228 = vld [vmem:[#allocation2 + $0x8] sm:$0xff]
    %v229 = vld [vmem:[%s5] sm:$0xff]
    %v230 = vld [vmem:[%s5 + $0x8] sm:$0xff]
    %v231 = vld [vmem:[%s5 + $0x10] sm:$0xff]
    %v232 = vld [vmem:[%s5 + $0x18] sm:$0xff]
    %v233 = vld [vmem:[%s5 + $0x20] sm:$0xff]
    %v234 = vld [vmem:[%s5 + $0x28] sm:$0xff]
    %v235 = vld [vmem:[%s5 + $0x30] sm:$0xff]
    %v236 = vld [vmem:[%s5 + $0x38] sm:$0xff]
    %v237 = vld [vmem:[%s5 + $0x40] sm:$0xff]
    %v238 = vld [vmem:[%s5 + $0x48] sm:$0xff]
    %v239 = vld [vmem:[%s5 + $0x50] sm:$0xff]
    %v240 = vld [vmem:[%s5 + $0x58] sm:$0xff]
    %v241 = vld [vmem:[%s5 + $0x60] sm:$0xff]
    %v242 = vld [vmem:[%s5 + $0x68] sm:$0xff]
    %v243 = vld [vmem:[%s5 + $0x70] sm:$0xff]
    %v244 = vld [vmem:[%s5 + $0x78] sm:$0xff]
    %245 = vmatprep.subr.mxu0 0.0
    %246 = vmatpush1.msra.mxu0 %v244
    %247 = vmatprep.subr.mxu0 0.0
    %248 = vmatpush1.msra.mxu0 %v243
    %249 = vmatprep.subr.mxu0 0.0
    %250 = vmatpush1.msra.mxu0 %v242
    %251 = vmatprep.subr.mxu0 0.0
    %252 = vmatpush1.msra.mxu0 %v241
    %253 = vmatprep.subr.mxu0 0.0
    %254 = vmatpush1.msra.mxu0 %v240
    %255 = vmatprep.subr.mxu0 0.0
    %256 = vmatpush1.msra.mxu0 %v239
    %257 = vmatprep.subr.mxu0 0.0
    %258 = vmatpush1.msra.mxu0 %v238
    %259 = vmatprep.subr.mxu0 0.0
    %260 = vmatpush1.msra.mxu0 %v237
    %261 = vmatprep.subr.mxu0 0.0
    %262 = vmatpush1.msra.mxu0 %v236
    %263 = vmatprep.subr.mxu0 0.0
    %264 = vmatpush1.msra.mxu0 %v235
    %265 = vmatprep.subr.mxu0 0.0
    %266 = vmatpush1.msra.mxu0 %v234
    %267 = vmatprep.subr.mxu0 0.0
    %268 = vmatpush1.msra.mxu0 %v233
    %269 = vmatprep.subr.mxu0 0.0
    %270 = vmatpush1.msra.mxu0 %v232
    %271 = vmatprep.subr.mxu0 0.0
    %272 = vmatpush1.msra.mxu0 %v231
    %273 = vmatprep.subr.mxu0 0.0
    %274 = vmatpush1.msra.mxu0 %v230
    %275 = vmatprep.subr.mxu0 0.0
    %276 = vmatpush1.msra.mxu0 %v229
    %277 = vmatprep.subr.mxu0 0.0
    %278 = vmatpush2.msra.mxu0 0.0
    %279 = vmatprep.subr.mxu0 0.0
    %280 = vmatpush2.msra.mxu0 0.0
    %281 = vmatprep.subr.mxu0 0.0
    %282 = vmatpush2.msra.mxu0 0.0
    %283 = vmatprep.subr.mxu0 0.0
    %284 = vmatpush2.msra.mxu0 0.0
    %285 = vmatprep.subr.mxu0 0.0
    %286 = vmatpush2.msra.mxu0 0.0
    %287 = vmatprep.subr.mxu0 0.0
    %288 = vmatpush2.msra.mxu0 0.0
    %289 = vmatprep.subr.mxu0 0.0
    %290 = vmatpush2.msra.mxu0 0.0
    %291 = vmatprep.subr.mxu0 0.0
    %292 = vmatpush2.msra.mxu0 0.0
    %293 = vmatprep.subr.mxu0 0.0
    %294 = vmatpush2.msra.mxu0 0.0
    %295 = vmatprep.subr.mxu0 0.0
    %296 = vmatpush2.msra.mxu0 0.0
    %297 = vmatprep.subr.mxu0 0.0
    %298 = vmatpush2.msra.mxu0 0.0
    %299 = vmatprep.subr.mxu0 0.0
    %300 = vmatpush2.msra.mxu0 0.0
    %301 = vmatprep.subr.mxu0 0.0
    %302 = vmatpush2.msra.mxu0 0.0
    %303 = vmatprep.subr.mxu0 0.0
    %304 = vmatpush2.msra.mxu0 0.0
    %305 = vmatprep.subr.mxu0 0.0
    %306 = vmatpush2.msra.mxu0 0.0
    %307 = vmatprep.subr.mxu0 0.0
    %308 = vmatpush2.msra.mxu0 0.0
    %309 = vmatprep.mubr.f32.mxu0 0.0
    %310 = vmatmul.mubr.f32.gmra.mxu0 %v225
    %v311 = vpop.f32.mrf.mxu0
    %v312 = vadd.f32 0.0, %v311
    %v313 = vpop.f32.mrf.mxu0
    %314 = vmatprep.mubr.f32.mxu0 0.0
    %315 = vmatmul.mubr.f32.gmra.mxu0 %v226
    %v316 = vpop.f32.mrf.mxu0
    %v317 = vadd.f32 0.0, %v316
    %v318 = vpop.f32.mrf.mxu0
    %319 = vdwg.mxu0
    %v320 = vadd.f32 %v227, %v312
    %v321 = vadd.f32 %v228, %v317
    %322 = vst.msk [vmem:[#allocation2] sm:$0xff] %vm47, %v320
    %323 = vst.msk [vmem:[#allocation2 + $0x8] sm:$0xff] %vm47, %v321
    // Predicated region
    $region34: #{tpu_custom_call.1} parent=1 // pred_check
      %p324 = pneg %p27
    $region35: #{tpu_custom_call.1} parent=1 // pred_check_branch
      %326 = sbr.rel (%p324) target = $region37
    $region36: #{tpu_custom_call.1} parent=1 // pred_region
      %v327 = vld [vmem:[#allocation2] sm:$0xff]
      %v328 = vld [vmem:[#allocation2 + $0x8] sm:$0xff]
      %v329 = vld [vmem:[%s6] sm:$0x1]
      %v331 = vlaneseq
      %v332 = vshrl.u32 %v331, 7
      %v333 = vsub.s32 0, %v332
      %v334 = vrot.slane %v329, %v333
      %v336 = vadd.f32 %v327, %v334
      %v337 = vadd.f32 %v328, %v334
      %338 = vst.msk [vmem:[#allocation3] sm:$0xff] %vm47, %v336
      %339 = vst.msk [vmem:[#allocation3 + $0x8] sm:$0xff] %vm47, %v337
    $region37: #{tpu_custom_call.1} parent=1 // pred_fallthru
      _
    // Predicated region
    $region38: #{tpu_custom_call.1} parent=1 // pred_check
      _
    $region39: #{tpu_custom_call.1} parent=1 // pred_check_branch
      %341 = sbr.rel (0) target = $region41
    $region40: #{tpu_custom_call.1} parent=1 // pred_region
      %s343 = ssub.s32 256, 256
      %344 = vsyncadd [#allocation4], %s343
      %s345 = sshll.u32 [#allocation3], 4
      %s346 = int_to_ptr.vmem [resolvable:$true] %s345
      %351 = dma.vmem_to_hbm [thread:$0]  %s346, 256, %s7, [#allocation4], 128, 128, 8
    $region41: #{tpu_custom_call.1} parent=1 // pred_fallthru
      _
    // Predicated region
    $region42: #{tpu_custom_call.1} parent=1 // pred_check
      _
    $region43: #{tpu_custom_call.1} parent=1 // pred_check_branch
      %353 = sbr.rel (0) target = $region45
    $region44: #{tpu_custom_call.1} parent=1 // pred_region
      %354 = dma.done [#allocation4], 256
    $region45: #{tpu_custom_call.1} parent=1 // pred_fallthru
      _
    %355 = vsyncpa [#allocation4], 1

</llo_original>
